<compile_context>
chip_gen: v5e
topology: v5e:2x2
jax: 0.10.0
libtpu: 0.0.40
codegen_flags: <defaults>
</compile_context>

<pallas_src>
import jax
import jax.numpy as jnp
from jax.experimental import pallas as pl
from jax.experimental.pallas import tpu as pltpu


def _copy_kernel(x_ref, o_ref):
    # Pure pass-through of the VMEM tile.
    o_ref[...] = x_ref[...]


def _round_down(v: int, m: int) -> int:
    return (v // m) * m


def _round_up(v: int, m: int) -> int:
    return ((v + m - 1) // m) * m


_LANE_CANDIDATES = (8192, 4096, 2048, 1024, 512, 256, 128)


def _make_block_spec(block_shape, index_map, buffer_count):
    """BlockSpec with optional deeper pipelining; silently falls back if unsupported."""
    if buffer_count is not None and buffer_count > 2:
        try:
            return pl.BlockSpec(block_shape, index_map,
                                pipeline_mode=pl.Buffered(buffer_count))
        except (TypeError, AttributeError):
            pass
    return pl.BlockSpec(block_shape, index_map)


def identity_first_stage(
    x: jax.Array,
    *,
    materialize_copy: bool = True,
    alias_input: bool = False,
    target_tile_bytes: int = 8 * 1024 * 1024,
    buffer_count: int = 3,
) -> jax.Array:
    """Forward pass of IdentityFirstStage: returns x unchanged (same shape/dtype/values).

    materialize_copy=False is the true identity (zero HBM traffic, zero kernels).
    alias_input=True adds input_output_aliases={0: 0} so the output reuses the input's
    HBM allocation when the caller donates the input buffer (removes the second
    allocation / peak-memory pressure; with a non-donated input XLA inserts a
    defensive copy instead, so it is off by default).
    """
    if not materialize_copy:
        return x
    if x.size == 0:
        return x

    orig_shape = x.shape
    dtype = x.dtype
    n = int(x.size)
    itemsize = jnp.dtype(dtype).itemsize
    # Sublane alignment for packed dtypes (f32: 8, bf16: 16, int8/fp8: 32).
    row_align = 8 * max(1, 4 // itemsize)
    # Clamp the tile target so the worst-case footprint (2 operands x 3 buffers + headroom)
    # stays under v7x's 64 MiB/TC physical VMEM.
    target_tile_bytes = max(128 * 1024, min(int(target_tile_bytes), 8 * 1024 * 1024))

    # ---- lane-dense 2D view (contiguous row-major reshape: free, no HBM copy) ----
    lane = next((c for c in _LANE_CANDIDATES if n % c == 0), None)
    if lane is not None:
        lane_dim = lane                       # multiple of 128 -> unmasked stores
    else:
        # Ragged: n is not a multiple of 128.  Keep the natural trailing dim.
        lane_dim = orig_shape[-1] if x.ndim >= 2 else n
    rows = n // lane_dim
    x2d = x.reshape(rows, lane_dim)

    # ---- lane tiling ----
    if lane_dim % 128 == 0 or lane_dim <= 128:
        tile_lane = lane_dim                  # single lane block (unmasked, or tiny full-dim)
    else:
        # Bulk lane blocks are 128-multiples (unmasked vst); only the edge block is masked.
        lane_budget = max(128, _round_down(target_tile_bytes // (row_align * itemsize), 128))
        tile_lane = min(_round_down(lane_dim, 128), lane_budget)
    lane_steps = pl.cdiv(lane_dim, tile_lane)

    # ---- row tiling ----
    if rows <= row_align:
        tile_rows = rows                      # block dim == full array dim -> (8,128) rule waived
    else:
        rows_aligned = _round_down(rows, row_align)
        row_budget = max(1, target_tile_bytes // (tile_lane * itemsize))
        tile_rows = max(row_align, min(_round_down(row_budget, row_align), rows_aligned))
        # Megacore: aim for >= 4 total grid steps (>= 2 per v7x TensorCore) so both cores
        # get work and input-prefetch / output-writeback DMAs overlap.
        min_steps = 4
        if lane_steps * pl.cdiv(rows, tile_rows) < min_steps and rows >= min_steps * row_align:
            tile_rows = max(row_align, _round_down(pl.cdiv(rows, min_steps), row_align))
        # Prefer a tile that exactly divides rows (no masked partial last block,
        # balanced two-core split).  Bounded downward search in row_align steps.
        if rows % row_align == 0:
            cand = tile_rows
            for _ in range(256):
                if cand < row_align:
                    break
                if rows % cand == 0:
                    tile_rows = cand
                    break
                cand -= row_align
    row_steps = pl.cdiv(rows, tile_rows)

    grid = (row_steps, lane_steps)
    total_steps = row_steps * lane_steps

    # Deeper buffering only pays off (and is only requested) on longer grids.
    bufs = buffer_count if (buffer_count and total_steps >= buffer_count) else 2

    # VMEM footprint uses the sublane/lane *padded* tile size.
    tile_bytes = _round_up(tile_rows, row_align) * _round_up(tile_lane, 128) * itemsize
    # in + out, each `bufs`-deep, plus headroom; floor at the universal 16 MiB default.
    vmem_limit = int(max(16 * 1024 * 1024, 2 * bufs * tile_bytes + 2 * 1024 * 1024))

    block_shape = (tile_rows, tile_lane)
    index_map = lambda i, j: (i, j)

    out2d = pl.pallas_call(
        _copy_kernel,
        out_shape=jax.ShapeDtypeStruct((rows, lane_dim), dtype),
        grid_spec=pltpu.PrefetchScalarGridSpec(
            num_scalar_prefetch=0,
            grid=grid,
            in_specs=[_make_block_spec(block_shape, index_map, bufs)],
            out_specs=_make_block_spec(block_shape, index_map, bufs),
        ),
        compiler_params=pltpu.CompilerParams(
            dimension_semantics=("parallel", "parallel"),
            vmem_limit_bytes=vmem_limit,
        ),
        cost_estimate=pl.CostEstimate(
            flops=0, transcendentals=0, bytes_accessed=2 * n * itemsize),
        input_output_aliases=({0: 0} if alias_input else {}),
    )(x2d)

    return out2d.reshape(orig_shape)   # free reshape back (no padding was ever added)


# encode / decode are also identity in the reference module.
def encode(x, *args, **kwargs):
    return identity_first_stage(x)


def decode(x, *args, **kwargs):
    return identity_first_stage(x)


if __name__ == "__main__":
    # IdentityFirstStage has no parameters; nothing to initialize.
    key = jax.random.PRNGKey(0)

    # Typical NCHW latent input (fast path: size divisible by 128).
    x = jax.random.normal(key, (2, 4, 16, 16), dtype=jnp.float32)
    y = jax.block_until_ready(identity_first_stage(x))
    assert y.shape == x.shape and y.dtype == x.dtype
    assert bool(jnp.all(y == x))

    # Ragged-size path (n % 128 != 0) + bf16 coverage.
    x2 = jax.random.normal(jax.random.PRNGKey(1), (3, 5, 40), dtype=jnp.bfloat16)
    y2 = jax.block_until_ready(identity_first_stage(x2))
    assert y2.shape == x2.shape and y2.dtype == x2.dtype
    assert bool(jnp.all(y2 == x2))

    # True-identity fast path (zero HBM traffic, zero kernels).
    z = identity_first_stage(x, materialize_copy=False)
    assert z is x

    print("KERNEL_OK")
</pallas_src>

<mosaic_0001>
module attributes {stable_mosaic.version = 11 : i64} {
  func.func @_copy_kernel(%arg0: i32, %arg1: i32, %arg2: memref<1x2048xf32, #tpu.memory_space<vmem>>, %arg3: memref<1x2048xf32, #tpu.memory_space<vmem>>) attributes {dimension_semantics = [#tpu.dimension_semantics<parallel>, #tpu.dimension_semantics<parallel>], iteration_bounds = array<i64: 1, 1>, scalar_prefetch = 0 : i64, scratch_operands = 0 : i64, tpu.core_type = #tpu.core_type<tc>, window_params = [{transform_indices = @transform_0, window_bounds = array<i64: 1, 2048>}, {transform_indices = @transform_1, window_bounds = array<i64: 1, 2048>}]} {
    %c0 = arith.constant 0 : index
    %c0_0 = arith.constant 0 : index
    %0 = vector.load %arg2[%c0, %c0_0] : memref<1x2048xf32, #tpu.memory_space<vmem>>, vector<1x2048xf32>
    %c0_1 = arith.constant 0 : index
    %c0_2 = arith.constant 0 : index
    %1 = vector.load %arg3[%c0_1, %c0_2] : memref<1x2048xf32, #tpu.memory_space<vmem>>, vector<1x2048xf32>
    tpu.vector_store %arg3[%c0_1, %c0_2], %0 {strides = array<i32>} : memref<1x2048xf32, #tpu.memory_space<vmem>>, vector<1x2048xf32>,
    return
  }
  func.func @transform_0(%arg0: i32, %arg1: i32) -> (i32, i32) {
    %c0_i32 = arith.constant 0 : i32
    return %arg0, %arg1 : i32, i32
  }
  func.func @transform_1(%arg0: i32, %arg1: i32) -> (i32, i32) {
    %c0_i32 = arith.constant 0 : i32
    return %arg0, %arg1 : i32, i32
  }
}

</mosaic_0001>

<llo_original>
// kernel: tpu_custom_call.1
$region0: #{tpu_custom_call.1}
  #allocation0 [shape = 'u32[]', space=smem, size = 0x4, offset = 0x4, fixed_abs, tag = 'smem constant byte address 0x4 - core index']
  #allocation1 [shape = 'u32[72,128]{1,0:T(1,128)}', space=vmem, size = 0x9000, scoped, tag = 'internal scratch']
  %s0 = inlined_call_operand.hbm [shape: f32[1,2048], index: 0, kind: input, shape index: {}]
  %s1 = inlined_call_operand.hbm [shape: f32[1,2048], index: 1, kind: output, shape index: {}]
  %s2 = sld [smem:[#allocation0]]
  $region18: #{tpu_custom_call.1} parent=0
    _
  %s4 = ssub.s32 1, %s2
  %s5 = scalar_select 0, %s4, %s2
  $region1: #{tpu_custom_call.1} parent=0
    #allocation2 [shape = 'u8[8192]{0}', space=vmem, size = 0x2000, scoped, tag = 'input window, operand 0, single buffered']
    #allocation3 [shape = 's32[1]{0}', space=sflag, size = 0x4, scoped, tag = 'scoped memory for tpu_custom_call.1']
    #allocation4 [shape = 's32[1]{0}', space=sflag, size = 0x4, scoped, tag = 'scoped memory for tpu_custom_call.1']
    #allocation5 [shape = 'u8[8192]{0}', space=vmem, size = 0x2000, scoped, tag = 'output window, operand 0, single buffered']
    %6 = vsyncpa [#allocation3], 0
    %7 = vsyncpa [#allocation4], 0
    // Predicated region
    $region2: #{tpu_custom_call.1} parent=1 // pred_check
      _
    $region3: #{tpu_custom_call.1} parent=1 // pred_check_branch
      %9 = sbr.rel (0) target = $region5
    $region4: #{tpu_custom_call.1} parent=1 // pred_region
      %11 = vsyncadd [#allocation3], 0
      %s13 = sshll.u32 %s0, 4
      %s14 = int_to_ptr.hbm [resolvable:$true] %s13
      %s15 = sshll.u32 [#allocation2], 4
      %s16 = int_to_ptr.vmem [resolvable:$true] %s15
      %18 = dma.hbm_to_vmem [thread:$0]  %s14, 256, %s16, [#allocation3]
    $region5: #{tpu_custom_call.1} parent=1 // pred_fallthru
      _
    // Predicated region
    $region6: #{tpu_custom_call.1} parent=1 // pred_check
      _
    $region7: #{tpu_custom_call.1} parent=1 // pred_check_branch
      %20 = sbr.rel (0) target = $region9
    $region8: #{tpu_custom_call.1} parent=1 // pred_region
      %22 = dma.done [#allocation3], 256
    $region9: #{tpu_custom_call.1} parent=1 // pred_fallthru
      _
    %v23 = vld [vmem:[#allocation2] sm:$0xff]
    %v24 = vld [vmem:[#allocation2 + $0x8] sm:$0xff]
    %25 = vst [vmem:[#allocation5] sm:$0xff] %v23
    %26 = vst [vmem:[#allocation5 + $0x8] sm:$0xff] %v24
    // Predicated region
    $region10: #{tpu_custom_call.1} parent=1 // pred_check
      _
    $region11: #{tpu_custom_call.1} parent=1 // pred_check_branch
      %28 = sbr.rel (0) target = $region13
    $region12: #{tpu_custom_call.1} parent=1 // pred_region
      %30 = vsyncadd [#allocation4], 0
      %s32 = sshll.u32 [#allocation5], 4
      %s33 = int_to_ptr.vmem [resolvable:$true] %s32
      %s34 = sshll.u32 %s1, 4
      %s35 = int_to_ptr.hbm [resolvable:$true] %s34
      %37 = dma.vmem_to_hbm [thread:$0]  %s33, 256, %s35, [#allocation4]
    $region13: #{tpu_custom_call.1} parent=1 // pred_fallthru
      _
    // Predicated region
    $region14: #{tpu_custom_call.1} parent=1 // pred_check
      _
    $region15: #{tpu_custom_call.1} parent=1 // pred_check_branch
      %39 = sbr.rel (0) target = $region17
    $region16: #{tpu_custom_call.1} parent=1 // pred_region
      %41 = dma.done [#allocation4], 256
    $region17: #{tpu_custom_call.1} parent=1 // pred_fallthru
      _
    %42 = vsyncpa [#allocation3], 1
    %43 = vsyncpa [#allocation4], 1

</llo_original>
